<compile_context>
chip_gen: v7x
topology: tpu7x:2x2x1
jax: 0.10.0
libtpu: 0.0.40
codegen_flags: <defaults>
</compile_context>

<pallas_src>
import math
from fractions import Fraction
from functools import lru_cache

import numpy as np
import jax
import jax.numpy as jnp
from jax.experimental import pallas as pl
from jax.experimental.pallas import tpu as pltpu


# ----------------------------- Irreps utilities (host-side glue) -----------------------------
def _round_up(x, m):
    return (x + m - 1) // m * m


def parse_irreps(s):
    """'8x0e+8x1e' -> [(mul, (l, parity)), ...], parity in {+1, -1}."""
    out = []
    for term in s.replace(" ", "").split("+"):
        mul_str, ir = term.split("x")
        l = int(ir[:-1])
        p = 1 if ir[-1] == "e" else -1
        out.append((int(mul_str), (l, p)))
    return out


def irreps_dim(irreps):
    return sum(mul * (2 * l + 1) for mul, (l, _p) in irreps)


def irreps_slices(irreps):
    sl, off = [], 0
    for mul, (l, _p) in irreps:
        d = mul * (2 * l + 1)
        sl.append((off, off + d))
        off += d
    return sl


def tp_path_exists(l1, p1, l2, p2, l3, p3):
    return (abs(l1 - l2) <= l3 <= l1 + l2) and (p1 * p2 == p3)


# ----------------------- real Wigner 3j (e3nn conventions), host-side glue -------------------
def _su2_cg_coeff(j1, m1, j2, m2, j3, m3):
    if m3 != m1 + m2:
        return 0.0
    vmin = int(max(-j1 + j2 + m3, -j1 + m1, 0))
    vmax = int(min(j2 + j3 + m1, j3 - j1 + j2, j3 + m3))
    f = lambda n: math.factorial(round(n))
    C = ((2.0 * j3 + 1.0) * Fraction(
        f(j3 + j1 - j2) * f(j3 - j1 + j2) * f(j1 + j2 - j3) * f(j3 + m3) * f(j3 - m3),
        f(j1 + j2 + j3 + 1) * f(j1 - m1) * f(j1 + m1) * f(j2 - m2) * f(j2 + m2))) ** 0.5
    S = 0
    for v in range(vmin, vmax + 1):
        S += (-1) ** (v + j2 + m2) * Fraction(
            f(j2 + j3 + m1 - v) * f(j1 - m1 + v),
            f(v) * f(j3 - j1 + j2 - v) * f(j3 + m3 - v) * f(j1 - j2 - m3 + v))
    return float(C * S)


def _su2_cg(j1, j2, j3):
    mat = np.zeros((2 * j1 + 1, 2 * j2 + 1, 2 * j3 + 1), dtype=np.float64)
    if abs(j1 - j2) <= j3 <= j1 + j2:
        for m1 in range(-j1, j1 + 1):
            for m2 in range(-j2, j2 + 1):
                m3 = m1 + m2
                if abs(m3) <= j3:
                    mat[j1 + m1, j2 + m2, j3 + m3] = _su2_cg_coeff(j1, m1, j2, m2, j3, m3)
    return mat


def _change_basis_real_to_complex(l):
    q = np.zeros((2 * l + 1, 2 * l + 1), dtype=np.complex128)
    for m in range(-l, 0):
        q[l + m, l + abs(m)] = 1.0 / math.sqrt(2)
        q[l + m, l - abs(m)] = -1j / math.sqrt(2)
    q[l, l] = 1.0
    for m in range(1, l + 1):
        q[l + m, l + abs(m)] = (-1) ** m / math.sqrt(2)
        q[l + m, l - abs(m)] = 1j * (-1) ** m / math.sqrt(2)
    return (-1j) ** l * q  # phase making the real CG coefficients real


@lru_cache(maxsize=None)
def wigner_3j(l1, l2, l3):
    """Real Wigner-3j tensor of shape (2l1+1, 2l2+1, 2l3+1), Frobenius-norm 1."""
    C = _su2_cg(l1, l2, l3).astype(np.complex128)
    Q1 = _change_basis_real_to_complex(l1)
    Q2 = _change_basis_real_to_complex(l2)
    Q3 = _change_basis_real_to_complex(l3)
    C = np.einsum("ij,kl,mn,ikn->jlm", Q1, Q2, np.conj(Q3.T), C)
    assert np.abs(C.imag).max() < 1e-5
    C = np.real(C)
    C = C / np.linalg.norm(C)
    return C.astype(np.float32)


# ------------------------------- module construction (glue) ----------------------------------
def build_module(irreps_in_str, tp_l_str, tp_r_str, key, const_dtype=jnp.float32):
    irreps_in = parse_irreps(irreps_in_str)
    tp_l = parse_irreps(tp_l_str)
    tp_r = parse_irreps(tp_r_str)

    # --- exactly the __init__ bookkeeping: multiplicities of the coupled irreps ---
    irreps_mul = {}
    for mul_l, (l_l, p_l) in tp_l:
        for mul_r, (l_r, p_r) in tp_r:
            p_str = "e" if p_l * p_r == 1 else "o"
            mul = mul_l * mul_r
            for deg in range(abs(l_l - l_r), l_l + l_r + 1):
                k = f"{deg}{p_str}"
                irreps_mul[k] = irreps_mul.get(k, 0) + mul
    irreps_mid_str = "+".join(f"{v}x{k}" for k, v in irreps_mul.items())
    irreps_mid = parse_irreps(irreps_mid_str)

    dim_in, dim_mid = irreps_dim(irreps_in), irreps_dim(irreps_mid)
    in_slices, mid_slices = irreps_slices(irreps_in), irreps_slices(irreps_mid)

    # --- PointwiseLinear weights (deterministic), expanded to a block-diagonal dense matrix ---
    w_big = np.zeros((dim_in, dim_mid), dtype=np.float32)
    n_keys = max(1, len(irreps_mid) * len(irreps_in))   # enough keys for any irreps config
    keys = iter(jax.random.split(key, n_keys))
    for oi, (mul_o, (lo, po)) in enumerate(irreps_mid):
        matches = [(ii, mi) for ii, (mi, (li, pi)) in enumerate(irreps_in) if (li, pi) == (lo, po)]
        if not matches:
            continue  # e3nn Linear: unmatched output irreps stay zero
        fan_in = sum(mi for _, mi in matches)
        for ii, mi in matches:
            w = np.asarray(jax.random.normal(next(keys), (mi, mul_o), jnp.float32)) / math.sqrt(fan_in)
            block = np.kron(w, np.eye(2 * lo + 1, dtype=np.float32))
            i0, i1 = in_slices[ii]
            o0, o1 = mid_slices[oi]
            w_big[i0:i1, o0:o1] += block

    # --- per tensor-product pair: dense Clebsch-Gordan contraction matrix, columns permuted ---
    # Original column order is (m, n, ll, lr); we pre-permute to the final 'bmlnr'
    # order (m, ll, n, lr) so the wrapper only needs a reshape (no transpose).
    # Then fuse with the linear:  fused_p = W @ M_p  (both are compile-time constants).
    irreps_mul_rem = dict(irreps_mul)
    pairs, fused_blocks = [], []
    col = 0
    for mul_l, (l_l, p_l) in tp_l:
        for mul_r, (l_r, p_r) in tp_r:
            mul = mul_l * mul_r
            L, R = 2 * l_l + 1, 2 * l_r + 1
            P = L * R
            m_mat = np.zeros((dim_mid, mul * P), dtype=np.float64)
            for i, (_mul_i, (deg, par)) in enumerate(irreps_mid):
                if not tp_path_exists(l_l, p_l, l_r, p_r, deg, par):
                    continue
                k = f"{deg}{'e' if par == 1 else 'o'}"
                start = mid_slices[i][0]
                stop = start + irreps_mul_rem[k] * (2 * deg + 1)
                start = stop - mul * (2 * deg + 1)
                cg = wigner_3j(l_l, l_r, deg).astype(np.float64)   # (L, R, 2d+1)
                cg2 = cg.reshape(P, 2 * deg + 1).T                 # (2d+1, P)
                for mn in range(mul):
                    r0 = start + mn * (2 * deg + 1)
                    m_mat[r0:r0 + 2 * deg + 1, mn * P:(mn + 1) * P] += cg2
                irreps_mul_rem[k] -= mul
            # column permute (m, n, ll, lr) -> (m, ll, n, lr)  == torch 'bmlnr' layout
            m_perm = (m_mat.reshape(dim_mid, mul_l, mul_r, L, R)
                      .transpose(0, 1, 3, 2, 4)
                      .reshape(dim_mid, mul * P))
            fused = w_big.astype(np.float64) @ m_perm              # (dim_in, mul*P)
            fused_blocks.append(fused)
            key_str = (f"{mul_l}x{l_l}{'e' if p_l == 1 else 'o'}"
                       f"*{mul_r}x{l_r}{'e' if p_r == 1 else 'o'}")
            pairs.append(dict(key=key_str, mul_l=mul_l, mul_r=mul_r,
                              l_l=l_l, l_r=l_r, p_l=p_l, p_r=p_r,
                              col_start=col, col_stop=col + mul * P))
            col += mul * P
    assert all(v == 0 for v in irreps_mul_rem.values())

    # --- concatenate all pairs column-wise; pad ONLY the column dim to a multiple of 128
    #     (lane-dense, unmasked output stores). K stays at dim_in: no host pad of x needed.
    total_cols = col
    c_pad = _round_up(max(total_cols, 1), 128)
    fused_np = np.zeros((dim_in, c_pad), dtype=np.float32)
    fused_np[:, :total_cols] = np.concatenate(fused_blocks, axis=1).astype(np.float32)
    fused_all = jnp.asarray(fused_np).astype(const_dtype)   # bf16 option for v5e/v6e/v7x MXU

    return dict(irreps_in=irreps_in, irreps_mid=irreps_mid, irreps_mul=irreps_mul,
                tp_l=tp_l, tp_r=tp_r, dim_in=dim_in, dim_mid=dim_mid,
                w_big=w_big, fused=fused_all, total_cols=total_cols,
                c_pad=c_pad, pairs=pairs)


# ------------------------------------- Pallas kernel ------------------------------------------
def _tp_kernel(x_ref, w_ref, o_ref):
    # Lane-dense MXU matmul on one (row-tile, col-tile) block of the fused constant:
    #   x tile (tn, dim_in) @ fused block (dim_in, tc) -> (tn, tc), f32 accumulation.
    x = x_ref[...]
    if x.dtype != w_ref.dtype:
        # in-kernel cast (cheap VPU op, hidden under the matmul); avoids an extra
        # full-array XLA cast pass over HBM when the constant is bf16.
        x = x.astype(w_ref.dtype)
    o_ref[...] = jnp.dot(x, w_ref[...],
                         preferred_element_type=jnp.float32).astype(o_ref.dtype)


def _vmem_budget_bytes():
    # Hardware-aware VMEM budget: ~96 MiB on v5e/v6e (128 MiB VMEM), ~48 MiB on v7x
    # (64 MiB/TC) and as the conservative fallback if the query is unavailable.
    cap = 64 << 20
    try:
        info = pltpu.get_tpu_info()
        cap = int(getattr(info, "vmem_capacity_bytes", cap))
    except Exception:
        pass
    return max(int(cap * 0.75), cap - (32 << 20))


def tensor_product_contraction(x, module, tile_n=512, tile_c=2048, out_dtype=jnp.float32):
    N = x.shape[0]
    dim_in = module["dim_in"]
    c_pad = module["c_pad"]
    fused = module["fused"]

    x_isz = jnp.dtype(x.dtype).itemsize
    w_isz = jnp.dtype(fused.dtype).itemsize
    o_isz = jnp.dtype(out_dtype).itemsize

    budget = _vmem_budget_bytes()
    tile_budget = budget - (4 << 20)     # headroom for Mosaic internal scratch

    # --- row tile: large (512 default) for HBM roofline, clamped to the (8-aligned) batch ---
    tn = min(_round_up(tile_n, 8), _round_up(N, 8))

    def need(t_n, t_c):
        # double-buffered x / constant / output tiles
        return 2 * (t_n * dim_in * x_isz + dim_in * t_c * w_isz + t_n * t_c * o_isz)

    # --- column tile: largest multiple of 128 that divides c_pad, <= preference, fits VMEM ---
    tc = 128
    for cand in range(128, c_pad + 1, 128):
        if c_pad % cand != 0 or cand > tile_c:
            continue
        if need(tn, cand) <= tile_budget:
            tc = cand
    while need(tn, tc) > tile_budget and tn > 8:   # last resort: shrink rows
        tn = max(8, _round_up(tn // 2, 8))

    # only the ragged row tail is padded (no K pad / no host-side cast -> no extra HBM pass)
    n_pad = _round_up(N, tn)
    xp = x if n_pad == N else jnp.pad(x, ((0, n_pad - N), (0, 0)))

    grid = (n_pad // tn, c_pad // tc)
    cost = pl.CostEstimate(
        flops=2 * n_pad * dim_in * c_pad,
        transcendentals=0,
        bytes_accessed=(n_pad * dim_in * x_isz + dim_in * c_pad * w_isz
                        + n_pad * c_pad * o_isz),
    )

    # TODO(synk): for very large dim_in add a trailing "arbitrary" K grid axis with an f32
    # VMEM accumulator scratch (pl.when init/finalize); unnecessary at these contraction sizes.
    out = pl.pallas_call(
        _tp_kernel,
        out_shape=jax.ShapeDtypeStruct((n_pad, c_pad), out_dtype),
        grid_spec=pltpu.PrefetchScalarGridSpec(
            num_scalar_prefetch=0,
            grid=grid,
            in_specs=[
                # x tile with full (unpadded) contraction dim; block = full array extent on K
                pl.BlockSpec((tn, dim_in), lambda i, j: (i, 0)),
                # fused constant streamed in lane-dense (dim_in, tc) column blocks
                pl.BlockSpec((dim_in, tc), lambda i, j: (0, j)),
            ],
            out_specs=pl.BlockSpec((tn, tc), lambda i, j: (i, j)),
        ),
        compiler_params=pltpu.CompilerParams(
            dimension_semantics=("parallel", "parallel"),
            vmem_limit_bytes=int(budget)),
        cost_estimate=cost,
    )(xp, fused)

    # layout plumbing only: slice off row/column padding, then per-pair reshape.
    # Columns were pre-permuted on the host, so this is a pure reshape (no transpose).
    out = out[:N, :module["total_cols"]]
    result = {}
    for pair in module["pairs"]:
        L, R = 2 * pair["l_l"] + 1, 2 * pair["l_r"] + 1
        blk = out[:, pair["col_start"]:pair["col_stop"]]
        result[pair["key"]] = blk.reshape(N, pair["mul_l"], L, pair["mul_r"], R)
    return result


# -------------------------------- pure-JAX reference (literal) --------------------------------
def reference_forward(x, module):
    hi = jax.lax.Precision.HIGHEST
    y = jnp.dot(x, jnp.asarray(module["w_big"]), precision=hi)
    irreps_mul_rem = dict(module["irreps_mul"])
    mid_slices = irreps_slices(module["irreps_mid"])
    tp = {}
    for mul_l, (l_l, p_l) in module["tp_l"]:
        for mul_r, (l_r, p_r) in module["tp_r"]:
            key = (f"{mul_l}x{l_l}{'e' if p_l == 1 else 'o'}"
                   f"*{mul_r}x{l_r}{'e' if p_r == 1 else 'o'}")
            tp[key] = 0
            mul = mul_l * mul_r
            for i, (_mul_i, (deg, par)) in enumerate(module["irreps_mid"]):
                if not tp_path_exists(l_l, p_l, l_r, p_r, deg, par):
                    continue
                k = f"{deg}{'e' if par == 1 else 'o'}"
                start = mid_slices[i][0]
                stop = start + irreps_mul_rem[k] * (2 * deg + 1)
                start = stop - mul * (2 * deg + 1)
                basis = jnp.asarray(wigner_3j(l_l, l_r, deg))
                a = y[:, start:stop].reshape(-1, mul_l, mul_r, 2 * deg + 1)
                tp[key] = tp[key] + jnp.einsum("bmni,lri->bmlnr", a, basis, precision=hi)
                irreps_mul_rem[k] -= mul
    return tp


# ------------------------------------------ main ----------------------------------------------
if __name__ == "__main__":
    key = jax.random.PRNGKey(0)
    k_w, k_x = jax.random.split(key)

    # small config: irreps_in = 8x0e+8x1e+8x2e (dim 72), tp_l = tp_r = 2x1o
    # -> intermediate irreps 4x0e+4x1e+4x2e (dim 36), one tp output of shape (N, 2, 3, 2, 3)
    module_f32 = build_module("8x0e+8x1e+8x2e", "2x1o", "2x1o", k_w, const_dtype=jnp.float32)

    N = 16
    x = jax.random.normal(k_x, (N, module_f32["dim_in"]), dtype=jnp.float32)

    ref = reference_forward(x, module_f32)

    # f32 constant path — tight check against the literal reference
    out = tensor_product_contraction(x, module_f32)
    out = jax.block_until_ready(out)
    for k in out:
        np.testing.assert_allclose(np.asarray(out[k]), np.asarray(ref[k]),
                                   rtol=2e-2, atol=2e-2)

    # bf16 constant path (v5e/v6e/v7x MXU fast path): x tile is cast to bf16 inside the
    # kernel, accumulation stays f32 — loose check (bf16 truncation of W@M and x).
    module_bf16 = build_module("8x0e+8x1e+8x2e", "2x1o", "2x1o", k_w, const_dtype=jnp.bfloat16)
    out_bf16 = tensor_product_contraction(x, module_bf16)
    out_bf16 = jax.block_until_ready(out_bf16)
    for k in out_bf16:
        np.testing.assert_allclose(np.asarray(out_bf16[k]), np.asarray(ref[k]),
                                   rtol=5e-2, atol=5e-2)

    print("KERNEL_OK")
</pallas_src>

<mosaic_0001>
module attributes {stable_mosaic.version = 11 : i64} {
  func.func @_tp_kernel(%arg0: i32, %arg1: i32, %arg2: memref<16x72xf32, #tpu.memory_space<vmem>>, %arg3: memref<72x128xf32, #tpu.memory_space<vmem>>, %arg4: memref<16x128xf32, #tpu.memory_space<vmem>>) attributes {dimension_semantics = [#tpu.dimension_semantics<parallel>, #tpu.dimension_semantics<parallel>], iteration_bounds = array<i64: 1, 1>, scalar_prefetch = 0 : i64, scratch_operands = 0 : i64, tpu.core_type = #tpu.core_type<tc>, window_params = [{transform_indices = @transform_0, window_bounds = array<i64: 16, 72>}, {transform_indices = @transform_1, window_bounds = array<i64: 72, 128>}, {transform_indices = @transform_2, window_bounds = array<i64: 16, 128>}]} {
    %c0 = arith.constant 0 : index
    %c0_0 = arith.constant 0 : index
    %0 = vector.load %arg2[%c0, %c0_0] : memref<16x72xf32, #tpu.memory_space<vmem>>, vector<16x72xf32>
    %c0_1 = arith.constant 0 : index
    %c0_2 = arith.constant 0 : index
    %1 = vector.load %arg3[%c0_1, %c0_2] : memref<72x128xf32, #tpu.memory_space<vmem>>, vector<72x128xf32>
    %cst = arith.constant dense<0.000000e+00> : vector<16x128xf32>
    %2 = tpu.matmul %0, %1, %cst {dimension_numbers = #tpu.dot_dimension_numbers<[1], [0], [0], [1], [0, 0, 1, 1], [], []>} : vector<16x72xf32>, vector<72x128xf32>, vector<16x128xf32> -> vector<16x128xf32>
    %c0_3 = arith.constant 0 : index
    %c0_4 = arith.constant 0 : index
    %3 = vector.load %arg4[%c0_3, %c0_4] : memref<16x128xf32, #tpu.memory_space<vmem>>, vector<16x128xf32>
    tpu.vector_store %arg4[%c0_3, %c0_4], %2 {strides = array<i32>} : memref<16x128xf32, #tpu.memory_space<vmem>>, vector<16x128xf32>,
    return
  }
  func.func @transform_0(%arg0: i32, %arg1: i32) -> (i32, i32) {
    %c0_i32 = arith.constant 0 : i32
    %c0_i32_0 = arith.constant 0 : i32
    return %arg0, %c0_i32 : i32, i32
  }
  func.func @transform_1(%arg0: i32, %arg1: i32) -> (i32, i32) {
    %c0_i32 = arith.constant 0 : i32
    %c0_i32_0 = arith.constant 0 : i32
    return %c0_i32, %arg1 : i32, i32
  }
  func.func @transform_2(%arg0: i32, %arg1: i32) -> (i32, i32) {
    %c0_i32 = arith.constant 0 : i32
    return %arg0, %arg1 : i32, i32
  }
}

</mosaic_0001>

<llo_original>
// kernel: tpu_custom_call.1
$region0: #{tpu_custom_call.1}
  #allocation0 [shape = 'u32[]', space=smem, size = 0x4, offset = 0x4, fixed_abs, tag = 'smem constant byte address 0x4 - core index']
  #allocation1 [shape = 'u32[144,128]{1,0:T(1,128)}', space=vmem, size = 0x12000, scoped, tag = 'internal scratch']
  %s0 = inlined_call_operand.hbm [shape: f32[16,72], index: 0, kind: input, shape index: {}]
  %s1 = inlined_call_operand.hbm [shape: f32[72,128], index: 1, kind: input, shape index: {}]
  %s2 = inlined_call_operand.hbm [shape: f32[16,128], index: 2, kind: output, shape index: {}]
  %s3 = sld [smem:[#allocation0]]
  $region26: #{tpu_custom_call.1} parent=0
    _
  %s5 = ssub.s32 1, %s3
  %s6 = scalar_select 0, %s5, %s3
  $region1: #{tpu_custom_call.1} parent=0
    #allocation2 [shape = 'u8[8192]{0}', space=vmem, size = 0x2000, scoped, tag = 'input window, operand 0, single buffered']
    #allocation3 [shape = 's32[1]{0}', space=sflag, size = 0x4, scoped, tag = 'scoped memory for tpu_custom_call.1']
    #allocation4 [shape = 's32[1]{0}', space=sflag, size = 0x4, scoped, tag = 'scoped memory for tpu_custom_call.1']
    #allocation5 [shape = 'u8[36864]{0}', space=vmem, size = 0x9000, scoped, tag = 'input window, operand 1, single buffered']
    #allocation6 [shape = 's32[1]{0}', space=sflag, size = 0x4, scoped, tag = 'scoped memory for tpu_custom_call.1']
    #allocation7 [shape = 'u8[8192]{0}', space=vmem, size = 0x2000, scoped, tag = 'output window, operand 0, single buffered']
    %7 = vsyncpa [#allocation3], 0
    %8 = vsyncpa [#allocation6], 0
    %9 = vsyncpa [#allocation4], 0
    // Predicated region
    $region2: #{tpu_custom_call.1} parent=1 // pred_check
      _
    $region3: #{tpu_custom_call.1} parent=1 // pred_check_branch
      %11 = sbr.rel (0) target = $region5
    $region4: #{tpu_custom_call.1} parent=1 // pred_region
      %s13 = ssub.s32 256, 256
      %14 = vsyncadd [#allocation3], %s13
      %s15 = sshll.u32 [#allocation2], 4
      %s16 = int_to_ptr.vmem [resolvable:$true] %s15
      %21 = dma.hbm_to_vmem [thread:$0]  %s0, 256, %s16, [#allocation3], 128, 128, 8
    $region5: #{tpu_custom_call.1} parent=1 // pred_fallthru
      _
    // Predicated region
    $region6: #{tpu_custom_call.1} parent=1 // pred_check
      _
    $region7: #{tpu_custom_call.1} parent=1 // pred_check_branch
      %23 = sbr.rel (0) target = $region9
    $region8: #{tpu_custom_call.1} parent=1 // pred_region
      %s25 = ssub.s32 1152, 1152
      %26 = vsyncadd [#allocation6], %s25
      %s27 = sshll.u32 [#allocation5], 4
      %s28 = int_to_ptr.vmem [resolvable:$true] %s27
      %33 = dma.hbm_to_vmem [thread:$0]  %s1, 1152, %s28, [#allocation6], 128, 128, 8
    $region9: #{tpu_custom_call.1} parent=1 // pred_fallthru
      _
    // Predicated region
    $region10: #{tpu_custom_call.1} parent=1 // pred_check
      _
    $region11: #{tpu_custom_call.1} parent=1 // pred_check_branch
      %35 = sbr.rel (0) target = $region13
    $region12: #{tpu_custom_call.1} parent=1 // pred_region
      %36 = dma.done [#allocation3], 256
    $region13: #{tpu_custom_call.1} parent=1 // pred_fallthru
      _
    // Predicated region
    $region14: #{tpu_custom_call.1} parent=1 // pred_check
      _
    $region15: #{tpu_custom_call.1} parent=1 // pred_check_branch
      %38 = sbr.rel (0) target = $region17
    $region16: #{tpu_custom_call.1} parent=1 // pred_region
      %39 = dma.done [#allocation6], 1152
    $region17: #{tpu_custom_call.1} parent=1 // pred_fallthru
      _
    %v40 = vld [vmem:[#allocation2] sm:$0xff]
    %v41 = vld [vmem:[#allocation2 + $0x8] sm:$0xff]
    %v42 = vld [vmem:[#allocation5] sm:$0xff]
    %v43 = vld [vmem:[#allocation5 + $0x8] sm:$0xff]
    %v44 = vld [vmem:[#allocation5 + $0x10] sm:$0xff]
    %v45 = vld [vmem:[#allocation5 + $0x18] sm:$0xff]
    %v46 = vld [vmem:[#allocation5 + $0x20] sm:$0xff]
    %v47 = vld [vmem:[#allocation5 + $0x28] sm:$0xff]
    %v48 = vld [vmem:[#allocation5 + $0x30] sm:$0xff]
    %v49 = vld [vmem:[#allocation5 + $0x38] sm:$0xff]
    %v50 = vld [vmem:[#allocation5 + $0x40] sm:$0xff]
    %vm51 = vcmask 588800
    %v53 = vsel %vm51, %v40, 0
    %v56 = vsel %vm51, %v41, 0
    %58 = vmatprep.subr.mxu0 0.0
    %59 = vmatpush1.msra.mxu0 %v42
    %60 = vmatprep.subr.mxu0 0.0
    %61 = vmatpush1.msra.mxu0 %v43
    %62 = vmatprep.subr.mxu0 0.0
    %63 = vmatpush1.msra.mxu0 %v44
    %64 = vmatprep.subr.mxu0 0.0
    %65 = vmatpush1.msra.mxu0 %v45
    %66 = vmatprep.subr.mxu0 0.0
    %67 = vmatpush1.msra.mxu0 %v46
    %68 = vmatprep.subr.mxu0 0.0
    %69 = vmatpush1.msra.mxu0 %v47
    %70 = vmatprep.subr.mxu0 0.0
    %71 = vmatpush1.msra.mxu0 %v48
    %72 = vmatprep.subr.mxu0 0.0
    %73 = vmatpush1.msra.mxu0 %v49
    %74 = vmatprep.subr.mxu0 0.0
    %75 = vmatpush1.msra.mxu0 %v50
    %76 = vmatprep.subr.mxu0 0.0
    %77 = vmatpush1.msra.mxu0 0.0
    %78 = vmatprep.subr.mxu0 0.0
    %79 = vmatpush1.msra.mxu0 0.0
    %80 = vmatprep.subr.mxu0 0.0
    %81 = vmatpush1.msra.mxu0 0.0
    %82 = vmatprep.subr.mxu0 0.0
    %83 = vmatpush1.msra.mxu0 0.0
    %84 = vmatprep.subr.mxu0 0.0
    %85 = vmatpush1.msra.mxu0 0.0
    %86 = vmatprep.subr.mxu0 0.0
    %87 = vmatpush1.msra.mxu0 0.0
    %88 = vmatprep.subr.mxu0 0.0
    %89 = vmatpush1.msra.mxu0 0.0
    %90 = vmatprep.subr.mxu0 0.0
    %91 = vmatpush1.msra.mxu0 0.0
    %92 = vmatprep.subr.mxu0 0.0
    %93 = vmatpush1.msra.mxu0 0.0
    %94 = vmatprep.subr.mxu0 0.0
    %95 = vmatpush1.msra.mxu0 0.0
    %96 = vmatprep.subr.mxu0 0.0
    %97 = vmatpush1.msra.mxu0 0.0
    %98 = vmatprep.subr.mxu0 0.0
    %99 = vmatpush1.msra.mxu0 0.0
    %100 = vmatprep.subr.mxu0 0.0
    %101 = vmatpush1.msra.mxu0 0.0
    %102 = vmatprep.subr.mxu0 0.0
    %103 = vmatpush1.msra.mxu0 0.0
    %104 = vmatprep.subr.mxu0 0.0
    %105 = vmatpush1.msra.mxu0 0.0
    %106 = vmatprep.subr.mxu0 0.0
    %107 = vmatpush1.msra.mxu0 0.0
    %108 = vmatprep.subr.mxu0 0.0
    %109 = vmatpush1.msra.mxu0 0.0
    %110 = vmatprep.subr.mxu0 0.0
    %111 = vmatpush1.msra.mxu0 0.0
    %112 = vmatprep.subr.mxu0 0.0
    %113 = vmatpush1.msra.mxu0 0.0
    %114 = vmatprep.subr.mxu0 0.0
    %115 = vmatpush1.msra.mxu0 0.0
    %116 = vmatprep.subr.mxu0 0.0
    %117 = vmatpush1.msra.mxu0 0.0
    %118 = vmatprep.subr.mxu0 0.0
    %119 = vmatpush1.msra.mxu0 0.0
    %120 = vmatprep.subr.mxu0 0.0
    %121 = vmatpush1.msra.mxu0 0.0
    %122 = vmatprep.mubr.f32.mxu0 0.0
    %123 = vmatmul.mubr.f32.gmra.mrb[0].mxu0 %v53
    %v124 = vpop.f32.mrb[0].mxu0
    %v125 = vadd.f32 0.0, %v124
    %v126 = vpop.f32.mrb[0].mxu0
    %127 = vmatprep.mubr.f32.mxu0 0.0
    %128 = vmatmul.mubr.f32.gmra.mrb[0].mxu0 %v56
    %v129 = vpop.f32.mrb[0].mxu0
    %v130 = vadd.f32 0.0, %v129
    %v131 = vpop.f32.mrb[0].mxu0
    %132 = vdwg.mxu0
    %133 = vst [vmem:[#allocation7] sm:$0xff] %v125
    %134 = vst [vmem:[#allocation7 + $0x8] sm:$0xff] %v130
    // Predicated region
    $region18: #{tpu_custom_call.1} parent=1 // pred_check
      _
    $region19: #{tpu_custom_call.1} parent=1 // pred_check_branch
      %136 = sbr.rel (0) target = $region21
    $region20: #{tpu_custom_call.1} parent=1 // pred_region
      %s138 = ssub.s32 256, 256
      %139 = vsyncadd [#allocation4], %s138
      %s140 = sshll.u32 [#allocation7], 4
      %s141 = int_to_ptr.vmem [resolvable:$true] %s140
      %146 = dma.vmem_to_hbm [thread:$0]  %s141, 256, %s2, [#allocation4], 128, 128, 8
    $region21: #{tpu_custom_call.1} parent=1 // pred_fallthru
      _
    // Predicated region
    $region22: #{tpu_custom_call.1} parent=1 // pred_check
      _
    $region23: #{tpu_custom_call.1} parent=1 // pred_check_branch
      %148 = sbr.rel (0) target = $region25
    $region24: #{tpu_custom_call.1} parent=1 // pred_region
      %149 = dma.done [#allocation4], 256
    $region25: #{tpu_custom_call.1} parent=1 // pred_fallthru
      _
    %150 = vsyncpa [#allocation3], 1
    %151 = vsyncpa [#allocation6], 1
    %152 = vsyncpa [#allocation4], 1

</llo_original>
